<compile_context>
chip_gen: v5e
topology: v5e:2x2
jax: 0.10.0
libtpu: 0.0.40
codegen_flags: <defaults>
</compile_context>

<pallas_src>
import functools

import jax
import jax.numpy as jnp
from jax import lax
from jax.experimental import pallas as pl
from jax.experimental.pallas import tpu as pltpu

BETA = 0.9        # membrane decay
THRESHOLD = 1.0   # firing threshold

_LANE = 128       # TPU lane width
_SUB = 32         # int8 native sublane tile (also covers bf16's 16 and f32's 8)
_VMEM_BLOCK_BUDGET = 12 << 20   # double-buffered in+out block budget (bytes)


def _round_up(n, m):
    return ((n + m - 1) // m) * m


# --------------------------------------------------------------------------- #
# Kernel: full T-step LIF recurrence for one row tile of the flattened state.  #
# --------------------------------------------------------------------------- #
def _lif_kernel(cur_ref, spk_ref, mem_ref, *, num_steps):
    """cur_ref: [TR, 128] f32; spk_ref: [T, TR, 128] int8; mem_ref: [T, TR, 128] bf16."""
    cur = cur_ref[...]                               # f32, constant across time
    mem0 = jnp.zeros_like(cur)
    spk0 = jnp.zeros_like(cur)

    def body(t, carry):
        mem, spk = carry                             # f32 state stays in vregs
        mem = BETA * mem + cur - THRESHOLD * spk     # reset-by-subtract
        spk = (mem > THRESHOLD).astype(jnp.float32)  # Heaviside (strict >)
        spk_ref[t] = spk.astype(spk_ref.dtype)       # exact 0/1 -> int8
        mem_ref[t] = mem.astype(mem_ref.dtype)       # record only is bf16
        return mem, spk

    # Capped unroll: enough ILP for the LLO scheduler without blowing vregs.
    lax.fori_loop(0, num_steps, body, (mem0, spk0), unroll=min(8, num_steps))


# --------------------------------------------------------------------------- #
# Hoisted Linear layer (one-shot, outside the time loop).                      #
# --------------------------------------------------------------------------- #
def _linear_current(x_nchw, w, b):
    B = x_nchw.shape[0]
    x = x_nchw.reshape(B, -1)
    cur = jnp.dot(x, w, preferred_element_type=jnp.float32,
                  precision=jax.lax.Precision.HIGHEST)
    return cur + b[None, :]


def _pick_row_tile(rows, num_steps):
    """Row-tile (multiple of 32) minimizing padding, preferring grid >= 2,
    keeping the double-buffered block under the VMEM budget."""
    per_row = 2 * _LANE * (4 + num_steps * (1 + 2))   # 2 bufs * (f32 in + T*(i8+bf16) out)
    max_tr = max(_SUB, min(512, (_VMEM_BLOCK_BUDGET // per_row) // _SUB * _SUB))
    best = None
    for tr in range(min(rows, max_tr), 0, -_SUB):
        ntiles = -(-rows // tr)
        pad = ntiles * tr - rows
        key = (pad, 0 if ntiles >= 2 else 1, -tr)
        if best is None or key < best[0]:
            best = (key, tr)
    return best[1]


# --------------------------------------------------------------------------- #
# Wrapper: pad/layout, pallas_call, un-pad back to [T, B, Hout] float32.       #
# --------------------------------------------------------------------------- #
def snn_forward_pass(x_nchw, w, b, num_steps):
    cur = _linear_current(x_nchw, w, b)               # [B, Hout] f32
    B, Hout = cur.shape
    N = B * Hout

    # Flatten (B, Hout) to one lane-dense axis; [rows, 128] with rows % 32 == 0.
    rows = _round_up(-(-N // _LANE), _SUB)
    tr = _pick_row_tile(rows, num_steps)
    rows_p = _round_up(rows, tr)
    Np = rows_p * _LANE
    cur_p = jnp.pad(cur.reshape(-1), (0, Np - N)).reshape(rows_p, _LANE)

    grid = (rows_p // tr,)
    kernel = functools.partial(_lif_kernel, num_steps=num_steps)

    block_bytes = 2 * tr * _LANE * (4 + num_steps * 3)            # double-buffered
    vmem_limit = max(32 << 20, min(2 * block_bytes, 64 << 20))
    cost = pl.CostEstimate(
        flops=4 * num_steps * Np,
        transcendentals=0,
        bytes_accessed=Np * 4 + num_steps * Np * (1 + 2),
    )

    spk_p, mem_p = pl.pallas_call(
        kernel,
        out_shape=(
            jax.ShapeDtypeStruct((num_steps, rows_p, _LANE), jnp.int8),
            jax.ShapeDtypeStruct((num_steps, rows_p, _LANE), jnp.bfloat16),
        ),
        grid_spec=pl.GridSpec(
            grid=grid,
            in_specs=[pl.BlockSpec((tr, _LANE), lambda i: (i, 0))],
            out_specs=(
                pl.BlockSpec((num_steps, tr, _LANE), lambda i: (0, i, 0)),
                pl.BlockSpec((num_steps, tr, _LANE), lambda i: (0, i, 0)),
            ),
        ),
        compiler_params=pltpu.CompilerParams(
            dimension_semantics=("parallel",),
            vmem_limit_bytes=vmem_limit,
        ),
        cost_estimate=cost,
    )(cur_p)

    # Un-pad + cast back to the module's [T, B, Hout] float32 outputs.
    # (Single fused XLA slice+convert; no-op reshape when N is already padded-free.)
    spk = spk_p.reshape(num_steps, Np)[:, :N].reshape(num_steps, B, Hout)
    mem = mem_p.reshape(num_steps, Np)[:, :N].reshape(num_steps, B, Hout)
    return spk.astype(jnp.float32), mem.astype(jnp.float32)


# --------------------------------------------------------------------------- #
# Pure-JAX reference (same hoisted Linear, same f32 recurrence).               #
# --------------------------------------------------------------------------- #
def _reference(x_nchw, w, b, num_steps):
    cur = _linear_current(x_nchw, w, b)
    mem = jnp.zeros_like(cur)
    spk = jnp.zeros_like(cur)
    spk_rec, mem_rec = [], []
    for _ in range(num_steps):
        mem = BETA * mem + cur - THRESHOLD * spk
        spk = (mem > THRESHOLD).astype(jnp.float32)
        spk_rec.append(spk)
        mem_rec.append(mem)
    return jnp.stack(spk_rec), jnp.stack(mem_rec)


if __name__ == "__main__":
    key = jax.random.PRNGKey(0)
    kx, kw, kb = jax.random.split(key, 3)

    # Small shapes consistent with an image-classification SNN head.
    B, C, H, W = 2, 4, 16, 16
    F = C * H * W
    HIDDEN = 32          # number of output neurons
    NUM_STEPS = 8

    x = jax.random.normal(kx, (B, C, H, W), jnp.float32)
    w = jax.random.normal(kw, (F, HIDDEN), jnp.float32) * (1.0 / jnp.sqrt(F))
    b = jax.random.normal(kb, (HIDDEN,), jnp.float32) * 0.01

    fwd = jax.jit(functools.partial(snn_forward_pass, num_steps=NUM_STEPS))
    spk_rec, mem_rec = fwd(x, w, b)
    jax.block_until_ready((spk_rec, mem_rec))

    spk_ref, mem_ref = _reference(x, w, b, NUM_STEPS)
    assert spk_rec.shape == (NUM_STEPS, B, HIDDEN)
    assert mem_rec.shape == (NUM_STEPS, B, HIDDEN)
    # Spikes are computed from the f32 in-vreg state and stored exactly (0/1).
    assert bool(jnp.array_equal(spk_rec, spk_ref))
    # Recorded membrane is bf16-rounded at the store only (state stays f32).
    assert bool(jnp.allclose(mem_rec, mem_ref, rtol=1e-2, atol=2e-2))

    print("KERNEL_OK")
</pallas_src>

<mosaic_0001>
module attributes {stable_mosaic.version = 11 : i64} {
  func.func @_lif_kernel(%arg0: i32, %arg1: memref<32x128xf32, #tpu.memory_space<vmem>>, %arg2: memref<8x32x128xi8, #tpu.memory_space<vmem>>, %arg3: memref<8x32x128xbf16, #tpu.memory_space<vmem>>) attributes {dimension_semantics = [#tpu.dimension_semantics<parallel>], iteration_bounds = array<i64: 1>, scalar_prefetch = 0 : i64, scratch_operands = 0 : i64, tpu.core_type = #tpu.core_type<tc>, window_params = [{transform_indices = @transform_0, window_bounds = array<i64: 32, 128>}, {transform_indices = @transform_1, window_bounds = array<i64: 8, 32, 128>}, {transform_indices = @transform_2, window_bounds = array<i64: 8, 32, 128>}]} {
    %c0 = arith.constant 0 : index
    %c0_0 = arith.constant 0 : index
    %0 = vector.load %arg1[%c0, %c0_0] : memref<32x128xf32, #tpu.memory_space<vmem>>, vector<32x128xf32>
    %cst = arith.constant 0.000000e+00 : f32
    %1 = vector.broadcast %cst : f32 to vector<32x128xf32>
    %cst_1 = arith.constant 0.000000e+00 : f32
    %2 = vector.broadcast %cst_1 : f32 to vector<32x128xf32>
    %c0_i32 = arith.constant 0 : i32
    %cst_2 = arith.constant 0.899999976 : f32
    %3 = vector.broadcast %cst_2 : f32 to vector<32x128xf32>
    %4 = arith.mulf %3, %1 : vector<32x128xf32>
    %5 = arith.addf %4, %0 : vector<32x128xf32>
    %cst_3 = arith.constant 1.000000e+00 : f32
    %6 = vector.broadcast %cst_3 : f32 to vector<32x128xf32>
    %7 = arith.mulf %6, %2 : vector<32x128xf32>
    %8 = arith.subf %5, %7 : vector<32x128xf32>
    %cst_4 = arith.constant 1.000000e+00 : f32
    %9 = vector.broadcast %cst_4 : f32 to vector<32x128xf32>
    %10 = arith.cmpf ogt, %8, %9 : vector<32x128xf32>
    %11 = arith.extui %10 : vector<32x128xi1> to vector<32x128xi32>
    %12 = arith.sitofp %11 : vector<32x128xi32> to vector<32x128xf32>
    %13 = arith.fptosi %12 : vector<32x128xf32> to vector<32x128xi8>
    %14 = arith.index_cast %c0_i32 : i32 to index
    %c0_5 = arith.constant 0 : index
    %c0_6 = arith.constant 0 : index
    %15 = vector.load %arg2[%14, %c0_5, %c0_6] : memref<8x32x128xi8, #tpu.memory_space<vmem>>, vector<1x32x128xi8>
    %16 = vector.shape_cast %15 : vector<1x32x128xi8> to vector<32x128xi8>
    %17 = vector.shape_cast %13 : vector<32x128xi8> to vector<1x32x128xi8>
    tpu.vector_store %arg2[%14, %c0_5, %c0_6], %17 {strides = array<i32>} : memref<8x32x128xi8, #tpu.memory_space<vmem>>, vector<1x32x128xi8>,
    %18 = arith.truncf %8 : vector<32x128xf32> to vector<32x128xbf16>
    %19 = arith.index_cast %c0_i32 : i32 to index
    %c0_7 = arith.constant 0 : index
    %c0_8 = arith.constant 0 : index
    %20 = vector.load %arg3[%19, %c0_7, %c0_8] : memref<8x32x128xbf16, #tpu.memory_space<vmem>>, vector<1x32x128xbf16>
    %21 = vector.shape_cast %20 : vector<1x32x128xbf16> to vector<32x128xbf16>
    %22 = vector.shape_cast %18 : vector<32x128xbf16> to vector<1x32x128xbf16>
    tpu.vector_store %arg3[%19, %c0_7, %c0_8], %22 {strides = array<i32>} : memref<8x32x128xbf16, #tpu.memory_space<vmem>>, vector<1x32x128xbf16>,
    %c1_i32 = arith.constant 1 : i32
    %cst_9 = arith.constant 0.899999976 : f32
    %23 = vector.broadcast %cst_9 : f32 to vector<32x128xf32>
    %24 = arith.mulf %23, %8 : vector<32x128xf32>
    %25 = arith.addf %24, %0 : vector<32x128xf32>
    %cst_10 = arith.constant 1.000000e+00 : f32
    %26 = vector.broadcast %cst_10 : f32 to vector<32x128xf32>
    %27 = arith.mulf %26, %12 : vector<32x128xf32>
    %28 = arith.subf %25, %27 : vector<32x128xf32>
    %cst_11 = arith.constant 1.000000e+00 : f32
    %29 = vector.broadcast %cst_11 : f32 to vector<32x128xf32>
    %30 = arith.cmpf ogt, %28, %29 : vector<32x128xf32>
    %31 = arith.extui %30 : vector<32x128xi1> to vector<32x128xi32>
    %32 = arith.sitofp %31 : vector<32x128xi32> to vector<32x128xf32>
    %33 = arith.fptosi %32 : vector<32x128xf32> to vector<32x128xi8>
    %34 = arith.index_cast %c1_i32 : i32 to index
    %c0_12 = arith.constant 0 : index
    %c0_13 = arith.constant 0 : index
    %35 = vector.load %arg2[%34, %c0_12, %c0_13] : memref<8x32x128xi8, #tpu.memory_space<vmem>>, vector<1x32x128xi8>
    %36 = vector.shape_cast %35 : vector<1x32x128xi8> to vector<32x128xi8>
    %37 = vector.shape_cast %33 : vector<32x128xi8> to vector<1x32x128xi8>
    tpu.vector_store %arg2[%34, %c0_12, %c0_13], %37 {strides = array<i32>} : memref<8x32x128xi8, #tpu.memory_space<vmem>>, vector<1x32x128xi8>,
    %38 = arith.truncf %28 : vector<32x128xf32> to vector<32x128xbf16>
    %39 = arith.index_cast %c1_i32 : i32 to index
    %c0_14 = arith.constant 0 : index
    %c0_15 = arith.constant 0 : index
    %40 = vector.load %arg3[%39, %c0_14, %c0_15] : memref<8x32x128xbf16, #tpu.memory_space<vmem>>, vector<1x32x128xbf16>
    %41 = vector.shape_cast %40 : vector<1x32x128xbf16> to vector<32x128xbf16>
    %42 = vector.shape_cast %38 : vector<32x128xbf16> to vector<1x32x128xbf16>
    tpu.vector_store %arg3[%39, %c0_14, %c0_15], %42 {strides = array<i32>} : memref<8x32x128xbf16, #tpu.memory_space<vmem>>, vector<1x32x128xbf16>,
    %c2_i32 = arith.constant 2 : i32
    %cst_16 = arith.constant 0.899999976 : f32
    %43 = vector.broadcast %cst_16 : f32 to vector<32x128xf32>
    %44 = arith.mulf %43, %28 : vector<32x128xf32>
    %45 = arith.addf %44, %0 : vector<32x128xf32>
    %cst_17 = arith.constant 1.000000e+00 : f32
    %46 = vector.broadcast %cst_17 : f32 to vector<32x128xf32>
    %47 = arith.mulf %46, %32 : vector<32x128xf32>
    %48 = arith.subf %45, %47 : vector<32x128xf32>
    %cst_18 = arith.constant 1.000000e+00 : f32
    %49 = vector.broadcast %cst_18 : f32 to vector<32x128xf32>
    %50 = arith.cmpf ogt, %48, %49 : vector<32x128xf32>
    %51 = arith.extui %50 : vector<32x128xi1> to vector<32x128xi32>
    %52 = arith.sitofp %51 : vector<32x128xi32> to vector<32x128xf32>
    %53 = arith.fptosi %52 : vector<32x128xf32> to vector<32x128xi8>
    %54 = arith.index_cast %c2_i32 : i32 to index
    %c0_19 = arith.constant 0 : index
    %c0_20 = arith.constant 0 : index
    %55 = vector.load %arg2[%54, %c0_19, %c0_20] : memref<8x32x128xi8, #tpu.memory_space<vmem>>, vector<1x32x128xi8>
    %56 = vector.shape_cast %55 : vector<1x32x128xi8> to vector<32x128xi8>
    %57 = vector.shape_cast %53 : vector<32x128xi8> to vector<1x32x128xi8>
    tpu.vector_store %arg2[%54, %c0_19, %c0_20], %57 {strides = array<i32>} : memref<8x32x128xi8, #tpu.memory_space<vmem>>, vector<1x32x128xi8>,
    %58 = arith.truncf %48 : vector<32x128xf32> to vector<32x128xbf16>
    %59 = arith.index_cast %c2_i32 : i32 to index
    %c0_21 = arith.constant 0 : index
    %c0_22 = arith.constant 0 : index
    %60 = vector.load %arg3[%59, %c0_21, %c0_22] : memref<8x32x128xbf16, #tpu.memory_space<vmem>>, vector<1x32x128xbf16>
    %61 = vector.shape_cast %60 : vector<1x32x128xbf16> to vector<32x128xbf16>
    %62 = vector.shape_cast %58 : vector<32x128xbf16> to vector<1x32x128xbf16>
    tpu.vector_store %arg3[%59, %c0_21, %c0_22], %62 {strides = array<i32>} : memref<8x32x128xbf16, #tpu.memory_space<vmem>>, vector<1x32x128xbf16>,
    %c3_i32 = arith.constant 3 : i32
    %cst_23 = arith.constant 0.899999976 : f32
    %63 = vector.broadcast %cst_23 : f32 to vector<32x128xf32>
    %64 = arith.mulf %63, %48 : vector<32x128xf32>
    %65 = arith.addf %64, %0 : vector<32x128xf32>
    %cst_24 = arith.constant 1.000000e+00 : f32
    %66 = vector.broadcast %cst_24 : f32 to vector<32x128xf32>
    %67 = arith.mulf %66, %52 : vector<32x128xf32>
    %68 = arith.subf %65, %67 : vector<32x128xf32>
    %cst_25 = arith.constant 1.000000e+00 : f32
    %69 = vector.broadcast %cst_25 : f32 to vector<32x128xf32>
    %70 = arith.cmpf ogt, %68, %69 : vector<32x128xf32>
    %71 = arith.extui %70 : vector<32x128xi1> to vector<32x128xi32>
    %72 = arith.sitofp %71 : vector<32x128xi32> to vector<32x128xf32>
    %73 = arith.fptosi %72 : vector<32x128xf32> to vector<32x128xi8>
    %74 = arith.index_cast %c3_i32 : i32 to index
    %c0_26 = arith.constant 0 : index
    %c0_27 = arith.constant 0 : index
    %75 = vector.load %arg2[%74, %c0_26, %c0_27] : memref<8x32x128xi8, #tpu.memory_space<vmem>>, vector<1x32x128xi8>
    %76 = vector.shape_cast %75 : vector<1x32x128xi8> to vector<32x128xi8>
    %77 = vector.shape_cast %73 : vector<32x128xi8> to vector<1x32x128xi8>
    tpu.vector_store %arg2[%74, %c0_26, %c0_27], %77 {strides = array<i32>} : memref<8x32x128xi8, #tpu.memory_space<vmem>>, vector<1x32x128xi8>,
    %78 = arith.truncf %68 : vector<32x128xf32> to vector<32x128xbf16>
    %79 = arith.index_cast %c3_i32 : i32 to index
    %c0_28 = arith.constant 0 : index
    %c0_29 = arith.constant 0 : index
    %80 = vector.load %arg3[%79, %c0_28, %c0_29] : memref<8x32x128xbf16, #tpu.memory_space<vmem>>, vector<1x32x128xbf16>
    %81 = vector.shape_cast %80 : vector<1x32x128xbf16> to vector<32x128xbf16>
    %82 = vector.shape_cast %78 : vector<32x128xbf16> to vector<1x32x128xbf16>
    tpu.vector_store %arg3[%79, %c0_28, %c0_29], %82 {strides = array<i32>} : memref<8x32x128xbf16, #tpu.memory_space<vmem>>, vector<1x32x128xbf16>,
    %c4_i32 = arith.constant 4 : i32
    %cst_30 = arith.constant 0.899999976 : f32
    %83 = vector.broadcast %cst_30 : f32 to vector<32x128xf32>
    %84 = arith.mulf %83, %68 : vector<32x128xf32>
    %85 = arith.addf %84, %0 : vector<32x128xf32>
    %cst_31 = arith.constant 1.000000e+00 : f32
    %86 = vector.broadcast %cst_31 : f32 to vector<32x128xf32>
    %87 = arith.mulf %86, %72 : vector<32x128xf32>
    %88 = arith.subf %85, %87 : vector<32x128xf32>
    %cst_32 = arith.constant 1.000000e+00 : f32
    %89 = vector.broadcast %cst_32 : f32 to vector<32x128xf32>
    %90 = arith.cmpf ogt, %88, %89 : vector<32x128xf32>
    %91 = arith.extui %90 : vector<32x128xi1> to vector<32x128xi32>
    %92 = arith.sitofp %91 : vector<32x128xi32> to vector<32x128xf32>
    %93 = arith.fptosi %92 : vector<32x128xf32> to vector<32x128xi8>
    %94 = arith.index_cast %c4_i32 : i32 to index
    %c0_33 = arith.constant 0 : index
    %c0_34 = arith.constant 0 : index
    %95 = vector.load %arg2[%94, %c0_33, %c0_34] : memref<8x32x128xi8, #tpu.memory_space<vmem>>, vector<1x32x128xi8>
    %96 = vector.shape_cast %95 : vector<1x32x128xi8> to vector<32x128xi8>
    %97 = vector.shape_cast %93 : vector<32x128xi8> to vector<1x32x128xi8>
    tpu.vector_store %arg2[%94, %c0_33, %c0_34], %97 {strides = array<i32>} : memref<8x32x128xi8, #tpu.memory_space<vmem>>, vector<1x32x128xi8>,
    %98 = arith.truncf %88 : vector<32x128xf32> to vector<32x128xbf16>
    %99 = arith.index_cast %c4_i32 : i32 to index
    %c0_35 = arith.constant 0 : index
    %c0_36 = arith.constant 0 : index
    %100 = vector.load %arg3[%99, %c0_35, %c0_36] : memref<8x32x128xbf16, #tpu.memory_space<vmem>>, vector<1x32x128xbf16>
    %101 = vector.shape_cast %100 : vector<1x32x128xbf16> to vector<32x128xbf16>
    %102 = vector.shape_cast %98 : vector<32x128xbf16> to vector<1x32x128xbf16>
    tpu.vector_store %arg3[%99, %c0_35, %c0_36], %102 {strides = array<i32>} : memref<8x32x128xbf16, #tpu.memory_space<vmem>>, vector<1x32x128xbf16>,
    %c5_i32 = arith.constant 5 : i32
    %cst_37 = arith.constant 0.899999976 : f32
    %103 = vector.broadcast %cst_37 : f32 to vector<32x128xf32>
    %104 = arith.mulf %103, %88 : vector<32x128xf32>
    %105 = arith.addf %104, %0 : vector<32x128xf32>
    %cst_38 = arith.constant 1.000000e+00 : f32
    %106 = vector.broadcast %cst_38 : f32 to vector<32x128xf32>
    %107 = arith.mulf %106, %92 : vector<32x128xf32>
    %108 = arith.subf %105, %107 : vector<32x128xf32>
    %cst_39 = arith.constant 1.000000e+00 : f32
    %109 = vector.broadcast %cst_39 : f32 to vector<32x128xf32>
    %110 = arith.cmpf ogt, %108, %109 : vector<32x128xf32>
    %111 = arith.extui %110 : vector<32x128xi1> to vector<32x128xi32>
    %112 = arith.sitofp %111 : vector<32x128xi32> to vector<32x128xf32>
    %113 = arith.fptosi %112 : vector<32x128xf32> to vector<32x128xi8>
    %114 = arith.index_cast %c5_i32 : i32 to index
    %c0_40 = arith.constant 0 : index
    %c0_41 = arith.constant 0 : index
    %115 = vector.load %arg2[%114, %c0_40, %c0_41] : memref<8x32x128xi8, #tpu.memory_space<vmem>>, vector<1x32x128xi8>
    %116 = vector.shape_cast %115 : vector<1x32x128xi8> to vector<32x128xi8>
    %117 = vector.shape_cast %113 : vector<32x128xi8> to vector<1x32x128xi8>
    tpu.vector_store %arg2[%114, %c0_40, %c0_41], %117 {strides = array<i32>} : memref<8x32x128xi8, #tpu.memory_space<vmem>>, vector<1x32x128xi8>,
    %118 = arith.truncf %108 : vector<32x128xf32> to vector<32x128xbf16>
    %119 = arith.index_cast %c5_i32 : i32 to index
    %c0_42 = arith.constant 0 : index
    %c0_43 = arith.constant 0 : index
    %120 = vector.load %arg3[%119, %c0_42, %c0_43] : memref<8x32x128xbf16, #tpu.memory_space<vmem>>, vector<1x32x128xbf16>
    %121 = vector.shape_cast %120 : vector<1x32x128xbf16> to vector<32x128xbf16>
    %122 = vector.shape_cast %118 : vector<32x128xbf16> to vector<1x32x128xbf16>
    tpu.vector_store %arg3[%119, %c0_42, %c0_43], %122 {strides = array<i32>} : memref<8x32x128xbf16, #tpu.memory_space<vmem>>, vector<1x32x128xbf16>,
    %c6_i32 = arith.constant 6 : i32
    %cst_44 = arith.constant 0.899999976 : f32
    %123 = vector.broadcast %cst_44 : f32 to vector<32x128xf32>
    %124 = arith.mulf %123, %108 : vector<32x128xf32>
    %125 = arith.addf %124, %0 : vector<32x128xf32>
    %cst_45 = arith.constant 1.000000e+00 : f32
    %126 = vector.broadcast %cst_45 : f32 to vector<32x128xf32>
    %127 = arith.mulf %126, %112 : vector<32x128xf32>
    %128 = arith.subf %125, %127 : vector<32x128xf32>
    %cst_46 = arith.constant 1.000000e+00 : f32
    %129 = vector.broadcast %cst_46 : f32 to vector<32x128xf32>
    %130 = arith.cmpf ogt, %128, %129 : vector<32x128xf32>
    %131 = arith.extui %130 : vector<32x128xi1> to vector<32x128xi32>
    %132 = arith.sitofp %131 : vector<32x128xi32> to vector<32x128xf32>
    %133 = arith.fptosi %132 : vector<32x128xf32> to vector<32x128xi8>
    %134 = arith.index_cast %c6_i32 : i32 to index
    %c0_47 = arith.constant 0 : index
    %c0_48 = arith.constant 0 : index
    %135 = vector.load %arg2[%134, %c0_47, %c0_48] : memref<8x32x128xi8, #tpu.memory_space<vmem>>, vector<1x32x128xi8>
    %136 = vector.shape_cast %135 : vector<1x32x128xi8> to vector<32x128xi8>
    %137 = vector.shape_cast %133 : vector<32x128xi8> to vector<1x32x128xi8>
    tpu.vector_store %arg2[%134, %c0_47, %c0_48], %137 {strides = array<i32>} : memref<8x32x128xi8, #tpu.memory_space<vmem>>, vector<1x32x128xi8>,
    %138 = arith.truncf %128 : vector<32x128xf32> to vector<32x128xbf16>
    %139 = arith.index_cast %c6_i32 : i32 to index
    %c0_49 = arith.constant 0 : index
    %c0_50 = arith.constant 0 : index
    %140 = vector.load %arg3[%139, %c0_49, %c0_50] : memref<8x32x128xbf16, #tpu.memory_space<vmem>>, vector<1x32x128xbf16>
    %141 = vector.shape_cast %140 : vector<1x32x128xbf16> to vector<32x128xbf16>
    %142 = vector.shape_cast %138 : vector<32x128xbf16> to vector<1x32x128xbf16>
    tpu.vector_store %arg3[%139, %c0_49, %c0_50], %142 {strides = array<i32>} : memref<8x32x128xbf16, #tpu.memory_space<vmem>>, vector<1x32x128xbf16>,
    %c7_i32 = arith.constant 7 : i32
    %cst_51 = arith.constant 0.899999976 : f32
    %143 = vector.broadcast %cst_51 : f32 to vector<32x128xf32>
    %144 = arith.mulf %143, %128 : vector<32x128xf32>
    %145 = arith.addf %144, %0 : vector<32x128xf32>
    %cst_52 = arith.constant 1.000000e+00 : f32
    %146 = vector.broadcast %cst_52 : f32 to vector<32x128xf32>
    %147 = arith.mulf %146, %132 : vector<32x128xf32>
    %148 = arith.subf %145, %147 : vector<32x128xf32>
    %cst_53 = arith.constant 1.000000e+00 : f32
    %149 = vector.broadcast %cst_53 : f32 to vector<32x128xf32>
    %150 = arith.cmpf ogt, %148, %149 : vector<32x128xf32>
    %151 = arith.extui %150 : vector<32x128xi1> to vector<32x128xi32>
    %152 = arith.sitofp %151 : vector<32x128xi32> to vector<32x128xf32>
    %153 = arith.fptosi %152 : vector<32x128xf32> to vector<32x128xi8>
    %154 = arith.index_cast %c7_i32 : i32 to index
    %c0_54 = arith.constant 0 : index
    %c0_55 = arith.constant 0 : index
    %155 = vector.load %arg2[%154, %c0_54, %c0_55] : memref<8x32x128xi8, #tpu.memory_space<vmem>>, vector<1x32x128xi8>
    %156 = vector.shape_cast %155 : vector<1x32x128xi8> to vector<32x128xi8>
    %157 = vector.shape_cast %153 : vector<32x128xi8> to vector<1x32x128xi8>
    tpu.vector_store %arg2[%154, %c0_54, %c0_55], %157 {strides = array<i32>} : memref<8x32x128xi8, #tpu.memory_space<vmem>>, vector<1x32x128xi8>,
    %158 = arith.truncf %148 : vector<32x128xf32> to vector<32x128xbf16>
    %159 = arith.index_cast %c7_i32 : i32 to index
    %c0_56 = arith.constant 0 : index
    %c0_57 = arith.constant 0 : index
    %160 = vector.load %arg3[%159, %c0_56, %c0_57] : memref<8x32x128xbf16, #tpu.memory_space<vmem>>, vector<1x32x128xbf16>
    %161 = vector.shape_cast %160 : vector<1x32x128xbf16> to vector<32x128xbf16>
    %162 = vector.shape_cast %158 : vector<32x128xbf16> to vector<1x32x128xbf16>
    tpu.vector_store %arg3[%159, %c0_56, %c0_57], %162 {strides = array<i32>} : memref<8x32x128xbf16, #tpu.memory_space<vmem>>, vector<1x32x128xbf16>,
    %c8_i32 = arith.constant 8 : i32
    return
  }
  func.func @transform_0(%arg0: i32) -> (i32, i32) {
    %c0_i32 = arith.constant 0 : i32
    %c0_i32_0 = arith.constant 0 : i32
    return %arg0, %c0_i32 : i32, i32
  }
  func.func @transform_1(%arg0: i32) -> (i32, i32, i32) {
    %c0_i32 = arith.constant 0 : i32
    %c0_i32_0 = arith.constant 0 : i32
    %c0_i32_1 = arith.constant 0 : i32
    return %c0_i32, %arg0, %c0_i32_0 : i32, i32, i32
  }
  func.func @transform_2(%arg0: i32) -> (i32, i32, i32) {
    %c0_i32 = arith.constant 0 : i32
    %c0_i32_0 = arith.constant 0 : i32
    %c0_i32_1 = arith.constant 0 : i32
    return %c0_i32, %arg0, %c0_i32_0 : i32, i32, i32
  }
}

</mosaic_0001>

<llo_original>
// kernel: snn_forward_pass.1
$region0: #{snn_forward_pass.1}
  #allocation0 [shape = 'u32[]', space=smem, size = 0x4, offset = 0x4, fixed_abs, tag = 'smem constant byte address 0x4 - core index']
  #allocation1 [shape = 'u32[72,128]{1,0:T(1,128)}', space=vmem, size = 0x9000, scoped, tag = 'internal scratch']
  %s0 = inlined_call_operand.vmem [shape: f32[32,128], index: 0, kind: input, shape index: {}]
  %s1 = inlined_call_operand.vmem [shape: s8[8,32,128], index: 1, kind: output, shape index: {0}]
  %s2 = inlined_call_operand.vmem [shape: bf16[8,32,128], index: 2, kind: output, shape index: {1}]
  %3 = xla_tuple %s1, %s2
  %s4 = sld [smem:[#allocation0]]
  $region22: #{snn_forward_pass.1} parent=0
    _
  %s6 = ssub.s32 1, %s4
  %s7 = scalar_select 0, %s6, %s4
  // Predicated region
  $region2: #{snn_forward_pass.1} parent=0 // pred_check
    _
  $region3: #{snn_forward_pass.1} parent=0 // pred_check_branch
    %9 = sbr.rel (0) target = $region5
  $region4: #{snn_forward_pass.1} parent=0 // pred_region
    _
  $region5: #{snn_forward_pass.1} parent=0 // pred_fallthru
    _
  %v10 = vld [vmem:[%s0] sm:$0xff]
  %v11 = vld [vmem:[%s0 + $0x8] sm:$0xff]
  %v12 = vld [vmem:[%s0 + $0x10] sm:$0xff]
  %v13 = vld [vmem:[%s0 + $0x18] sm:$0xff]
  %v14 = vadd.f32 %v10, 0.0
  %v15 = vadd.f32 %v11, 0.0
  %v16 = vadd.f32 %v12, 0.0
  %v17 = vadd.f32 %v13, 0.0
  %vm18 = vcmp.gt.f32.partialorder %v14, 1.0
  %vm19 = vcmp.gt.f32.partialorder %v15, 1.0
  %vm20 = vcmp.gt.f32.partialorder %v16, 1.0
  %vm21 = vcmp.gt.f32.partialorder %v17, 1.0
  %v22 = vsel %vm18, 1, 0
  %v23 = vsel %vm19, 1, 0
  %v24 = vsel %vm20, 1, 0
  %v25 = vsel %vm21, 1, 0
  %v26 = vcvt.s32.f32 %v22
  %v27 = vcvt.s32.f32 %v23
  %v28 = vcvt.s32.f32 %v24
  %v29 = vcvt.s32.f32 %v25
  %v30 = vmax.f32 %v26, -128.0
  %v31 = vmax.f32 %v27, -128.0
  %v32 = vmax.f32 %v28, -128.0
  %v33 = vmax.f32 %v29, -128.0
  %v34 = vmin.f32 %v30, 127.0
  %v35 = vmin.f32 %v31, 127.0
  %v36 = vmin.f32 %v32, 127.0
  %v37 = vmin.f32 %v33, 127.0
  %v38 = vcvt.f32.s32.to.zero.pseudo %v34
  %v39 = vcvt.f32.s32.to.zero.pseudo %v35
  %v40 = vcvt.f32.s32.to.zero.pseudo %v36
  %v41 = vcvt.f32.s32.to.zero.pseudo %v37
  %v42 = vpack.c.b16 %v38, %v38
  %v43 = vpack.c.b8 %v42, %v42
  %v44 = vpack.c.b16 %v39, %v39
  %v45 = vpack.c.b8 %v44, %v44
  %v46 = vpack.c.b16 %v40, %v40
  %v47 = vpack.c.b8 %v46, %v46
  %v48 = vpack.c.b16 %v41, %v41
  %v49 = vpack.c.b8 %v48, %v48
  %50 = vst [vmem:[%s1] sm:$0x3] %v43
  %51 = vst [vmem:[%s1 + $0x2] sm:$0x3] %v45
  %52 = vst [vmem:[%s1 + $0x4] sm:$0x3] %v47
  %53 = vst [vmem:[%s1 + $0x6] sm:$0x3] %v49
  %v54 = vpack.c.bf16 %v14, %v14
  %v55 = vpack.c.bf16 %v15, %v15
  %v56 = vpack.c.bf16 %v16, %v16
  %v57 = vpack.c.bf16 %v17, %v17
  %58 = vst [vmem:[%s2] sm:$0xf] %v54
  %59 = vst [vmem:[%s2 + $0x4] sm:$0xf] %v55
  %60 = vst [vmem:[%s2 + $0x8] sm:$0xf] %v56
  %61 = vst [vmem:[%s2 + $0xc] sm:$0xf] %v57
  %v62 = vmul.f32 %v14, 0.9
  %v63 = vmul.f32 %v15, 0.9
  %v64 = vmul.f32 %v16, 0.9
  %v65 = vmul.f32 %v17, 0.9
  %v66 = vadd.f32 %v62, %v10
  %v67 = vadd.f32 %v63, %v11
  %v68 = vadd.f32 %v64, %v12
  %v69 = vadd.f32 %v65, %v13
  %v70 = vsub.f32 %v66, %v26
  %v71 = vsub.f32 %v67, %v27
  %v72 = vsub.f32 %v68, %v28
  %v73 = vsub.f32 %v69, %v29
  %vm74 = vcmp.gt.f32.partialorder %v70, 1.0
  %vm75 = vcmp.gt.f32.partialorder %v71, 1.0
  %vm76 = vcmp.gt.f32.partialorder %v72, 1.0
  %vm77 = vcmp.gt.f32.partialorder %v73, 1.0
  %v78 = vsel %vm74, 1, 0
  %v79 = vsel %vm75, 1, 0
  %v80 = vsel %vm76, 1, 0
  %v81 = vsel %vm77, 1, 0
  %v82 = vcvt.s32.f32 %v78
  %v83 = vcvt.s32.f32 %v79
  %v84 = vcvt.s32.f32 %v80
  %v85 = vcvt.s32.f32 %v81
  %v86 = vmax.f32 %v82, -128.0
  %v87 = vmax.f32 %v83, -128.0
  %v88 = vmax.f32 %v84, -128.0
  %v89 = vmax.f32 %v85, -128.0
  %v90 = vmin.f32 %v86, 127.0
  %v91 = vmin.f32 %v87, 127.0
  %v92 = vmin.f32 %v88, 127.0
  %v93 = vmin.f32 %v89, 127.0
  %v94 = vcvt.f32.s32.to.zero.pseudo %v90
  %v95 = vcvt.f32.s32.to.zero.pseudo %v91
  %v96 = vcvt.f32.s32.to.zero.pseudo %v92
  %v97 = vcvt.f32.s32.to.zero.pseudo %v93
  %v98 = vpack.c.b16 %v94, %v94
  %v99 = vpack.c.b8 %v98, %v98
  %v100 = vpack.c.b16 %v95, %v95
  %v101 = vpack.c.b8 %v100, %v100
  %v102 = vpack.c.b16 %v96, %v96
  %v103 = vpack.c.b8 %v102, %v102
  %v104 = vpack.c.b16 %v97, %v97
  %v105 = vpack.c.b8 %v104, %v104
  %s106 = scalar_lea.vmem %s1, 8
  %107 = vst [vmem:[%s106] sm:$0x3] %v99
  %108 = vst [vmem:[%s106 + $0x2] sm:$0x3] %v101
  %109 = vst [vmem:[%s106 + $0x4] sm:$0x3] %v103
  %110 = vst [vmem:[%s106 + $0x6] sm:$0x3] %v105
  %v111 = vpack.c.bf16 %v70, %v70
  %v112 = vpack.c.bf16 %v71, %v71
  %v113 = vpack.c.bf16 %v72, %v72
  %v114 = vpack.c.bf16 %v73, %v73
  %s115 = scalar_lea.vmem %s2, 16
  %116 = vst [vmem:[%s115] sm:$0xf] %v111
  %117 = vst [vmem:[%s115 + $0x4] sm:$0xf] %v112
  %118 = vst [vmem:[%s115 + $0x8] sm:$0xf] %v113
  %119 = vst [vmem:[%s115 + $0xc] sm:$0xf] %v114
  %v120 = vmul.f32 %v70, 0.9
  %v121 = vmul.f32 %v71, 0.9
  %v122 = vmul.f32 %v72, 0.9
  %v123 = vmul.f32 %v73, 0.9
  %v124 = vadd.f32 %v120, %v10
  %v125 = vadd.f32 %v121, %v11
  %v126 = vadd.f32 %v122, %v12
  %v127 = vadd.f32 %v123, %v13
  %v128 = vsub.f32 %v124, %v82
  %v129 = vsub.f32 %v125, %v83
  %v130 = vsub.f32 %v126, %v84
  %v131 = vsub.f32 %v127, %v85
  %vm132 = vcmp.gt.f32.partialorder %v128, 1.0
  %vm133 = vcmp.gt.f32.partialorder %v129, 1.0
  %vm134 = vcmp.gt.f32.partialorder %v130, 1.0
  %vm135 = vcmp.gt.f32.partialorder %v131, 1.0
  %v136 = vsel %vm132, 1, 0
  %v137 = vsel %vm133, 1, 0
  %v138 = vsel %vm134, 1, 0
  %v139 = vsel %vm135, 1, 0
  %v140 = vcvt.s32.f32 %v136
  %v141 = vcvt.s32.f32 %v137
  %v142 = vcvt.s32.f32 %v138
  %v143 = vcvt.s32.f32 %v139
  %v144 = vmax.f32 %v140, -128.0
  %v145 = vmax.f32 %v141, -128.0
  %v146 = vmax.f32 %v142, -128.0
  %v147 = vmax.f32 %v143, -128.0
  %v148 = vmin.f32 %v144, 127.0
  %v149 = vmin.f32 %v145, 127.0
  %v150 = vmin.f32 %v146, 127.0
  %v151 = vmin.f32 %v147, 127.0
  %v152 = vcvt.f32.s32.to.zero.pseudo %v148
  %v153 = vcvt.f32.s32.to.zero.pseudo %v149
  %v154 = vcvt.f32.s32.to.zero.pseudo %v150
  %v155 = vcvt.f32.s32.to.zero.pseudo %v151
  %v156 = vpack.c.b16 %v152, %v152
  %v157 = vpack.c.b8 %v156, %v156
  %v158 = vpack.c.b16 %v153, %v153
  %v159 = vpack.c.b8 %v158, %v158
  %v160 = vpack.c.b16 %v154, %v154
  %v161 = vpack.c.b8 %v160, %v160
  %v162 = vpack.c.b16 %v155, %v155
  %v163 = vpack.c.b8 %v162, %v162
  %s164 = scalar_lea.vmem %s1, 16
  %165 = vst [vmem:[%s164] sm:$0x3] %v157
  %166 = vst [vmem:[%s164 + $0x2] sm:$0x3] %v159
  %167 = vst [vmem:[%s164 + $0x4] sm:$0x3] %v161
  %168 = vst [vmem:[%s164 + $0x6] sm:$0x3] %v163
  %v169 = vpack.c.bf16 %v128, %v128
  %v170 = vpack.c.bf16 %v129, %v129
  %v171 = vpack.c.bf16 %v130, %v130
  %v172 = vpack.c.bf16 %v131, %v131
  %s173 = scalar_lea.vmem %s2, 32
  %174 = vst [vmem:[%s173] sm:$0xf] %v169
  %175 = vst [vmem:[%s173 + $0x4] sm:$0xf] %v170
  %176 = vst [vmem:[%s173 + $0x8] sm:$0xf] %v171
  %177 = vst [vmem:[%s173 + $0xc] sm:$0xf] %v172
  %v178 = vmul.f32 %v128, 0.9
  %v179 = vmul.f32 %v129, 0.9
  %v180 = vmul.f32 %v130, 0.9
  %v181 = vmul.f32 %v131, 0.9
  %v182 = vadd.f32 %v178, %v10
  %v183 = vadd.f32 %v179, %v11
  %v184 = vadd.f32 %v180, %v12
  %v185 = vadd.f32 %v181, %v13
  %v186 = vsub.f32 %v182, %v140
  %v187 = vsub.f32 %v183, %v141
  %v188 = vsub.f32 %v184, %v142
  %v189 = vsub.f32 %v185, %v143
  %vm190 = vcmp.gt.f32.partialorder %v186, 1.0
  %vm191 = vcmp.gt.f32.partialorder %v187, 1.0
  %vm192 = vcmp.gt.f32.partialorder %v188, 1.0
  %vm193 = vcmp.gt.f32.partialorder %v189, 1.0
  %v194 = vsel %vm190, 1, 0
  %v195 = vsel %vm191, 1, 0
  %v196 = vsel %vm192, 1, 0
  %v197 = vsel %vm193, 1, 0
  %v198 = vcvt.s32.f32 %v194
  %v199 = vcvt.s32.f32 %v195
  %v200 = vcvt.s32.f32 %v196
  %v201 = vcvt.s32.f32 %v197
  %v202 = vmax.f32 %v198, -128.0
  %v203 = vmax.f32 %v199, -128.0
  %v204 = vmax.f32 %v200, -128.0
  %v205 = vmax.f32 %v201, -128.0
  %v206 = vmin.f32 %v202, 127.0
  %v207 = vmin.f32 %v203, 127.0
  %v208 = vmin.f32 %v204, 127.0
  %v209 = vmin.f32 %v205, 127.0
  %v210 = vcvt.f32.s32.to.zero.pseudo %v206
  %v211 = vcvt.f32.s32.to.zero.pseudo %v207
  %v212 = vcvt.f32.s32.to.zero.pseudo %v208
  %v213 = vcvt.f32.s32.to.zero.pseudo %v209
  %v214 = vpack.c.b16 %v210, %v210
  %v215 = vpack.c.b8 %v214, %v214
  %v216 = vpack.c.b16 %v211, %v211
  %v217 = vpack.c.b8 %v216, %v216
  %v218 = vpack.c.b16 %v212, %v212
  %v219 = vpack.c.b8 %v218, %v218
  %v220 = vpack.c.b16 %v213, %v213
  %v221 = vpack.c.b8 %v220, %v220
  %s222 = scalar_lea.vmem %s1, 24
  %223 = vst [vmem:[%s222] sm:$0x3] %v215
  %224 = vst [vmem:[%s222 + $0x2] sm:$0x3] %v217
  %225 = vst [vmem:[%s222 + $0x4] sm:$0x3] %v219
  %226 = vst [vmem:[%s222 + $0x6] sm:$0x3] %v221
  %v227 = vpack.c.bf16 %v186, %v186
  %v228 = vpack.c.bf16 %v187, %v187
  %v229 = vpack.c.bf16 %v188, %v188
  %v230 = vpack.c.bf16 %v189, %v189
  %s231 = scalar_lea.vmem %s2, 48
  %232 = vst [vmem:[%s231] sm:$0xf] %v227
  %233 = vst [vmem:[%s231 + $0x4] sm:$0xf] %v228
  %234 = vst [vmem:[%s231 + $0x8] sm:$0xf] %v229
  %235 = vst [vmem:[%s231 + $0xc] sm:$0xf] %v230
  %v236 = vmul.f32 %v186, 0.9
  %v237 = vmul.f32 %v187, 0.9
  %v238 = vmul.f32 %v188, 0.9
  %v239 = vmul.f32 %v189, 0.9
  %v240 = vadd.f32 %v236, %v10
  %v241 = vadd.f32 %v237, %v11
  %v242 = vadd.f32 %v238, %v12
  %v243 = vadd.f32 %v239, %v13
  %v244 = vsub.f32 %v240, %v198
  %v245 = vsub.f32 %v241, %v199
  %v246 = vsub.f32 %v242, %v200
  %v247 = vsub.f32 %v243, %v201
  %vm248 = vcmp.gt.f32.partialorder %v244, 1.0
  %vm249 = vcmp.gt.f32.partialorder %v245, 1.0
  %vm250 = vcmp.gt.f32.partialorder %v246, 1.0
  %vm251 = vcmp.gt.f32.partialorder %v247, 1.0
  %v252 = vsel %vm248, 1, 0
  %v253 = vsel %vm249, 1, 0
  %v254 = vsel %vm250, 1, 0
  %v255 = vsel %vm251, 1, 0
  %v256 = vcvt.s32.f32 %v252
  %v257 = vcvt.s32.f32 %v253
  %v258 = vcvt.s32.f32 %v254
  %v259 = vcvt.s32.f32 %v255
  %v260 = vmax.f32 %v256, -128.0
  %v261 = vmax.f32 %v257, -128.0
  %v262 = vmax.f32 %v258, -128.0
  %v263 = vmax.f32 %v259, -128.0
  %v264 = vmin.f32 %v260, 127.0
  %v265 = vmin.f32 %v261, 127.0
  %v266 = vmin.f32 %v262, 127.0
  %v267 = vmin.f32 %v263, 127.0
  %v268 = vcvt.f32.s32.to.zero.pseudo %v264
  %v269 = vcvt.f32.s32.to.zero.pseudo %v265
  %v270 = vcvt.f32.s32.to.zero.pseudo %v266
  %v271 = vcvt.f32.s32.to.zero.pseudo %v267
  %v272 = vpack.c.b16 %v268, %v268
  %v273 = vpack.c.b8 %v272, %v272
  %v274 = vpack.c.b16 %v269, %v269
  %v275 = vpack.c.b8 %v274, %v274
  %v276 = vpack.c.b16 %v270, %v270
  %v277 = vpack.c.b8 %v276, %v276
  %v278 = vpack.c.b16 %v271, %v271
  %v279 = vpack.c.b8 %v278, %v278
  %s280 = scalar_lea.vmem %s1, 32
  %281 = vst [vmem:[%s280] sm:$0x3] %v273
  %282 = vst [vmem:[%s280 + $0x2] sm:$0x3] %v275
  %283 = vst [vmem:[%s280 + $0x4] sm:$0x3] %v277
  %284 = vst [vmem:[%s280 + $0x6] sm:$0x3] %v279
  %v285 = vpack.c.bf16 %v244, %v244
  %v286 = vpack.c.bf16 %v245, %v245
  %v287 = vpack.c.bf16 %v246, %v246
  %v288 = vpack.c.bf16 %v247, %v247
  %s289 = scalar_lea.vmem %s2, 64
  %290 = vst [vmem:[%s289] sm:$0xf] %v285
  %291 = vst [vmem:[%s289 + $0x4] sm:$0xf] %v286
  %292 = vst [vmem:[%s289 + $0x8] sm:$0xf] %v287
  %293 = vst [vmem:[%s289 + $0xc] sm:$0xf] %v288
  %v294 = vmul.f32 %v244, 0.9
  %v295 = vmul.f32 %v245, 0.9
  %v296 = vmul.f32 %v246, 0.9
  %v297 = vmul.f32 %v247, 0.9
  %v298 = vadd.f32 %v294, %v10
  %v299 = vadd.f32 %v295, %v11
  %v300 = vadd.f32 %v296, %v12
  %v301 = vadd.f32 %v297, %v13
  %v302 = vsub.f32 %v298, %v256
  %v303 = vsub.f32 %v299, %v257
  %v304 = vsub.f32 %v300, %v258
  %v305 = vsub.f32 %v301, %v259
  %vm306 = vcmp.gt.f32.partialorder %v302, 1.0
  %vm307 = vcmp.gt.f32.partialorder %v303, 1.0
  %vm308 = vcmp.gt.f32.partialorder %v304, 1.0
  %vm309 = vcmp.gt.f32.partialorder %v305, 1.0
  %v310 = vsel %vm306, 1, 0
  %v311 = vsel %vm307, 1, 0
  %v312 = vsel %vm308, 1, 0
  %v313 = vsel %vm309, 1, 0
  %v314 = vcvt.s32.f32 %v310
  %v315 = vcvt.s32.f32 %v311
  %v316 = vcvt.s32.f32 %v312
  %v317 = vcvt.s32.f32 %v313
  %v318 = vmax.f32 %v314, -128.0
  %v319 = vmax.f32 %v315, -128.0
  %v320 = vmax.f32 %v316, -128.0
  %v321 = vmax.f32 %v317, -128.0
  %v322 = vmin.f32 %v318, 127.0
  %v323 = vmin.f32 %v319, 127.0
  %v324 = vmin.f32 %v320, 127.0
  %v325 = vmin.f32 %v321, 127.0
  %v326 = vcvt.f32.s32.to.zero.pseudo %v322
  %v327 = vcvt.f32.s32.to.zero.pseudo %v323
  %v328 = vcvt.f32.s32.to.zero.pseudo %v324
  %v329 = vcvt.f32.s32.to.zero.pseudo %v325
  %v330 = vpack.c.b16 %v326, %v326
  %v331 = vpack.c.b8 %v330, %v330
  %v332 = vpack.c.b16 %v327, %v327
  %v333 = vpack.c.b8 %v332, %v332
  %v334 = vpack.c.b16 %v328, %v328
  %v335 = vpack.c.b8 %v334, %v334
  %v336 = vpack.c.b16 %v329, %v329
  %v337 = vpack.c.b8 %v336, %v336
  %s338 = scalar_lea.vmem %s1, 40
  %339 = vst [vmem:[%s338] sm:$0x3] %v331
  %340 = vst [vmem:[%s338 + $0x2] sm:$0x3] %v333
  %341 = vst [vmem:[%s338 + $0x4] sm:$0x3] %v335
  %342 = vst [vmem:[%s338 + $0x6] sm:$0x3] %v337
  %v343 = vpack.c.bf16 %v302, %v302
  %v344 = vpack.c.bf16 %v303, %v303
  %v345 = vpack.c.bf16 %v304, %v304
  %v346 = vpack.c.bf16 %v305, %v305
  %s347 = scalar_lea.vmem %s2, 80
  %348 = vst [vmem:[%s347] sm:$0xf] %v343
  %349 = vst [vmem:[%s347 + $0x4] sm:$0xf] %v344
  %350 = vst [vmem:[%s347 + $0x8] sm:$0xf] %v345
  %351 = vst [vmem:[%s347 + $0xc] sm:$0xf] %v346
  %v352 = vmul.f32 %v302, 0.9
  %v353 = vmul.f32 %v303, 0.9
  %v354 = vmul.f32 %v304, 0.9
  %v355 = vmul.f32 %v305, 0.9
  %v356 = vadd.f32 %v352, %v10
  %v357 = vadd.f32 %v353, %v11
  %v358 = vadd.f32 %v354, %v12
  %v359 = vadd.f32 %v355, %v13
  %v360 = vsub.f32 %v356, %v314
  %v361 = vsub.f32 %v357, %v315
  %v362 = vsub.f32 %v358, %v316
  %v363 = vsub.f32 %v359, %v317
  %vm364 = vcmp.gt.f32.partialorder %v360, 1.0
  %vm365 = vcmp.gt.f32.partialorder %v361, 1.0
  %vm366 = vcmp.gt.f32.partialorder %v362, 1.0
  %vm367 = vcmp.gt.f32.partialorder %v363, 1.0
  %v368 = vsel %vm364, 1, 0
  %v369 = vsel %vm365, 1, 0
  %v370 = vsel %vm366, 1, 0
  %v371 = vsel %vm367, 1, 0
  %v372 = vcvt.s32.f32 %v368
  %v373 = vcvt.s32.f32 %v369
  %v374 = vcvt.s32.f32 %v370
  %v375 = vcvt.s32.f32 %v371
  %v376 = vmax.f32 %v372, -128.0
  %v377 = vmax.f32 %v373, -128.0
  %v378 = vmax.f32 %v374, -128.0
  %v379 = vmax.f32 %v375, -128.0
  %v380 = vmin.f32 %v376, 127.0
  %v381 = vmin.f32 %v377, 127.0
  %v382 = vmin.f32 %v378, 127.0
  %v383 = vmin.f32 %v379, 127.0
  %v384 = vcvt.f32.s32.to.zero.pseudo %v380
  %v385 = vcvt.f32.s32.to.zero.pseudo %v381
  %v386 = vcvt.f32.s32.to.zero.pseudo %v382
  %v387 = vcvt.f32.s32.to.zero.pseudo %v383
  %v388 = vpack.c.b16 %v384, %v384
  %v389 = vpack.c.b8 %v388, %v388
  %v390 = vpack.c.b16 %v385, %v385
  %v391 = vpack.c.b8 %v390, %v390
  %v392 = vpack.c.b16 %v386, %v386
  %v393 = vpack.c.b8 %v392, %v392
  %v394 = vpack.c.b16 %v387, %v387
  %v395 = vpack.c.b8 %v394, %v394
  %s396 = scalar_lea.vmem %s1, 48
  %397 = vst [vmem:[%s396] sm:$0x3] %v389
  %398 = vst [vmem:[%s396 + $0x2] sm:$0x3] %v391
  %399 = vst [vmem:[%s396 + $0x4] sm:$0x3] %v393
  %400 = vst [vmem:[%s396 + $0x6] sm:$0x3] %v395
  %v401 = vpack.c.bf16 %v360, %v360
  %v402 = vpack.c.bf16 %v361, %v361
  %v403 = vpack.c.bf16 %v362, %v362
  %v404 = vpack.c.bf16 %v363, %v363
  %s405 = scalar_lea.vmem %s2, 96
  %406 = vst [vmem:[%s405] sm:$0xf] %v401
  %407 = vst [vmem:[%s405 + $0x4] sm:$0xf] %v402
  %408 = vst [vmem:[%s405 + $0x8] sm:$0xf] %v403
  %409 = vst [vmem:[%s405 + $0xc] sm:$0xf] %v404
  %v410 = vmul.f32 %v360, 0.9
  %v411 = vmul.f32 %v361, 0.9
  %v412 = vmul.f32 %v362, 0.9
  %v413 = vmul.f32 %v363, 0.9
  %v414 = vadd.f32 %v410, %v10
  %v415 = vadd.f32 %v411, %v11
  %v416 = vadd.f32 %v412, %v12
  %v417 = vadd.f32 %v413, %v13
  %v418 = vsub.f32 %v414, %v372
  %v419 = vsub.f32 %v415, %v373
  %v420 = vsub.f32 %v416, %v374
  %v421 = vsub.f32 %v417, %v375
  %vm422 = vcmp.gt.f32.partialorder %v418, 1.0
  %vm423 = vcmp.gt.f32.partialorder %v419, 1.0
  %vm424 = vcmp.gt.f32.partialorder %v420, 1.0
  %vm425 = vcmp.gt.f32.partialorder %v421, 1.0
  %v426 = vsel %vm422, 1, 0
  %v427 = vsel %vm423, 1, 0
  %v428 = vsel %vm424, 1, 0
  %v429 = vsel %vm425, 1, 0
  %v430 = vcvt.s32.f32 %v426
  %v431 = vcvt.s32.f32 %v427
  %v432 = vcvt.s32.f32 %v428
  %v433 = vcvt.s32.f32 %v429
  %v434 = vmax.f32 %v430, -128.0
  %v435 = vmax.f32 %v431, -128.0
  %v436 = vmax.f32 %v432, -128.0
  %v437 = vmax.f32 %v433, -128.0
  %v438 = vmin.f32 %v434, 127.0
  %v439 = vmin.f32 %v435, 127.0
  %v440 = vmin.f32 %v436, 127.0
  %v441 = vmin.f32 %v437, 127.0
  %v442 = vcvt.f32.s32.to.zero.pseudo %v438
  %v443 = vcvt.f32.s32.to.zero.pseudo %v439
  %v444 = vcvt.f32.s32.to.zero.pseudo %v440
  %v445 = vcvt.f32.s32.to.zero.pseudo %v441
  %v446 = vpack.c.b16 %v442, %v442
  %v447 = vpack.c.b8 %v446, %v446
  %v448 = vpack.c.b16 %v443, %v443
  %v449 = vpack.c.b8 %v448, %v448
  %v450 = vpack.c.b16 %v444, %v444
  %v451 = vpack.c.b8 %v450, %v450
  %v452 = vpack.c.b16 %v445, %v445
  %v453 = vpack.c.b8 %v452, %v452
  %s454 = scalar_lea.vmem %s1, 56
  %455 = vst [vmem:[%s454] sm:$0x3] %v447
  %456 = vst [vmem:[%s454 + $0x2] sm:$0x3] %v449
  %457 = vst [vmem:[%s454 + $0x4] sm:$0x3] %v451
  %458 = vst [vmem:[%s454 + $0x6] sm:$0x3] %v453
  %v459 = vpack.c.bf16 %v418, %v418
  %v460 = vpack.c.bf16 %v419, %v419
  %v461 = vpack.c.bf16 %v420, %v420
  %v462 = vpack.c.bf16 %v421, %v421
  %s463 = scalar_lea.vmem %s2, 112
  %464 = vst [vmem:[%s463] sm:$0xf] %v459
  %465 = vst [vmem:[%s463 + $0x4] sm:$0xf] %v460
  %466 = vst [vmem:[%s463 + $0x8] sm:$0xf] %v461
  %467 = vst [vmem:[%s463 + $0xc] sm:$0xf] %v462
  // Predicated region
  $region6: #{snn_forward_pass.1} parent=0 // pred_check
    _
  $region7: #{snn_forward_pass.1} parent=0 // pred_check_branch
    %469 = sbr.rel (0) target = $region9
  $region8: #{snn_forward_pass.1} parent=0 // pred_region
    _
  $region9: #{snn_forward_pass.1} parent=0 // pred_fallthru
    _
  // Predicated region
  $region10: #{snn_forward_pass.1} parent=0 // pred_check
    _
  $region11: #{snn_forward_pass.1} parent=0 // pred_check_branch
    %471 = sbr.rel (0) target = $region13
  $region12: #{snn_forward_pass.1} parent=0 // pred_region
    _
  $region13: #{snn_forward_pass.1} parent=0 // pred_fallthru
    _
  // Predicated region
  $region14: #{snn_forward_pass.1} parent=0 // pred_check
    _
  $region15: #{snn_forward_pass.1} parent=0 // pred_check_branch
    %473 = sbr.rel (0) target = $region17
  $region16: #{snn_forward_pass.1} parent=0 // pred_region
    _
  $region17: #{snn_forward_pass.1} parent=0 // pred_fallthru
    _
  // Predicated region
  $region18: #{snn_forward_pass.1} parent=0 // pred_check
    _
  $region19: #{snn_forward_pass.1} parent=0 // pred_check_branch
    %475 = sbr.rel (0) target = $region21
  $region20: #{snn_forward_pass.1} parent=0 // pred_region
    _
  $region21: #{snn_forward_pass.1} parent=0 // pred_fallthru
    _

</llo_original>
